<compile_context>
chip_gen: v5e
topology: v5e:2x2
jax: 0.10.0
libtpu: 0.0.40
codegen_flags: <defaults>
</compile_context>

<pallas_src>
import functools

import jax
import jax.numpy as jnp
from jax import lax
from jax.experimental import pallas as pl
from jax.experimental.pallas import tpu as pltpu

_LANE = 128
_MIB = 1024 * 1024


@functools.lru_cache(maxsize=1)
def _vmem_budget():
    """(target_block_bytes, vmem_limit_bytes) for the local TPU generation."""
    try:
        vmem_cap = int(pltpu.get_tpu_info().vmem_capacity_bytes)
    except Exception:
        vmem_cap = 64 * _MIB  # conservative fallback (v7x-sized)
    if vmem_cap >= 100 * _MIB:          # v5e / v6e: 128 MiB VMEM per core
        return 16 * _MIB, 96 * _MIB
    return 8 * _MIB, 40 * _MIB          # v7x: 64 MiB VMEM per core


def _round_up(n, m):
    return -(-n // m) * m


def _pool_kernel_single(x_ref, o_ref):
    """Whole reduction row in one block: one reduce + relayout per row tile."""
    o_ref[...] = jnp.max(x_ref[...], axis=-1)[None, None, :]


def _pool_kernel_multi(x_ref, o_ref, acc_ref, *, hw, tile_hw, hw_chunks,
                       pad_val, mask_last):
    """Chunked HW: VPU-only folding maxes into a (tile_r, 128) accumulator;
    the XLU cross-lane reduce + relayout runs only on the last chunk."""
    k = pl.program_id(1)
    dtype = x_ref.dtype
    n_slices = tile_hw // _LANE

    def masked(v, off):
        if not mask_last:
            return v
        col = k * tile_hw + off + lax.broadcasted_iota(jnp.int32, v.shape, 1)
        return jnp.where(col < hw, v, jnp.asarray(pad_val, dtype))

    folded = masked(x_ref[:, 0:_LANE], 0)
    if n_slices > 1:
        def body(j, acc):
            off = pl.multiple_of(j * _LANE, _LANE)
            return jnp.maximum(acc, masked(x_ref[:, pl.ds(off, _LANE)], off))
        folded = lax.fori_loop(1, n_slices, body, folded)

    @pl.when(k == 0)
    def _():
        acc_ref[...] = folded

    @pl.when(k > 0)
    def _():
        acc_ref[...] = jnp.maximum(acc_ref[...], folded)

    @pl.when(k == hw_chunks - 1)
    def _():
        o_ref[...] = jnp.max(acc_ref[...], axis=-1)[None, None, :]


@functools.partial(jax.jit, static_argnames=("target_block_bytes",))
def adaptive_max_pool2d(x, *, target_block_bytes=None):
    """Equivalent of AdaptiveMaxPool2d(1): max over (-2, -1) with keepdims."""
    N, C, H, W = x.shape
    dtype = x.dtype
    itemsize = jnp.dtype(dtype).itemsize
    R = N * C
    HW = H * W
    sublane = max(8, 32 // itemsize)   # 8 for f32, 16 for bf16, 32 for int8

    hw_target, vmem_limit = _vmem_budget()
    target = target_block_bytes if target_block_bytes is not None else hw_target

    # max-identity for masking a ragged last HW chunk (multi-chunk path only).
    if jnp.issubdtype(dtype, jnp.floating):
        pad_val = float(jnp.finfo(dtype).min) if itemsize == 1 else -float("inf")
    elif jnp.issubdtype(dtype, jnp.integer):
        pad_val = int(jnp.iinfo(dtype).min)
    else:  # bool
        pad_val = False

    x2 = x.reshape(R, HW)  # free view for contiguous NCHW

    # ---- HW (reduction) axis: whole row per block when the budget allows ----
    # Budget uses the lane-PADDED width, ceil(HW/128)*128 (actual VMEM tile).
    hw_lane = _round_up(HW, _LANE)
    if hw_lane * itemsize * sublane <= target:
        tile_hw = HW          # full-dim block: no 128 constraint, no mask
        hw_width = hw_lane
        hw_chunks = 1
    else:
        # Huge HW: keep up to 128 rows, give the rest of the budget to HW.
        tile_r_pref = min(_LANE, _round_up(R, sublane))
        tile_hw = max(_LANE,
                      (target // (tile_r_pref * itemsize)) // _LANE * _LANE)
        hw_width = tile_hw
        hw_chunks = -(-HW // tile_hw)

    # ---- row axis ------------------------------------------------------------
    rows_budget = max(1, target // (hw_width * itemsize))
    if rows_budget >= _LANE:
        rows_fit = (rows_budget // _LANE) * _LANE   # lane-dense output tile
    else:
        rows_fit = max(sublane, (rows_budget // sublane) * sublane)
    tile_r = min(rows_fit, _round_up(R, sublane))
    row_tiles = -(-R // tile_r)
    if row_tiles == 1 and R > sublane:
        # Keep >=2 "parallel" tiles so both v7x TensorCores have work.
        tile_r = _round_up(-(-R // 2), sublane)
        row_tiles = -(-R // tile_r)

    cost = pl.CostEstimate(flops=R * HW, transcendentals=0,
                           bytes_accessed=R * HW * itemsize + R * itemsize)
    out_shape = jax.ShapeDtypeStruct((row_tiles, 1, tile_r), dtype)

    if hw_chunks == 1:
        out = pl.pallas_call(
            _pool_kernel_single,
            out_shape=out_shape,
            grid_spec=pltpu.PrefetchScalarGridSpec(
                num_scalar_prefetch=0,
                grid=(row_tiles,),
                in_specs=[pl.BlockSpec((tile_r, tile_hw), lambda i: (i, 0))],
                out_specs=pl.BlockSpec((1, 1, tile_r), lambda i: (i, 0, 0)),
            ),
            compiler_params=pltpu.CompilerParams(
                dimension_semantics=("parallel",),
                vmem_limit_bytes=vmem_limit,
            ),
            cost_estimate=cost,
        )(x2)
    else:
        kernel = functools.partial(
            _pool_kernel_multi,
            hw=HW, tile_hw=tile_hw, hw_chunks=hw_chunks,
            pad_val=pad_val, mask_last=(HW % tile_hw != 0),
        )
        out = pl.pallas_call(
            kernel,
            out_shape=out_shape,
            grid_spec=pltpu.PrefetchScalarGridSpec(
                num_scalar_prefetch=0,
                grid=(row_tiles, hw_chunks),
                in_specs=[pl.BlockSpec((tile_r, tile_hw), lambda i, k: (i, k))],
                out_specs=pl.BlockSpec((1, 1, tile_r), lambda i, k: (i, 0, 0)),
                scratch_shapes=[pltpu.VMEM((tile_r, _LANE), dtype)],
            ),
            compiler_params=pltpu.CompilerParams(
                dimension_semantics=("parallel", "arbitrary"),
                vmem_limit_bytes=vmem_limit,
            ),
            cost_estimate=cost,
        )(x2)

    # Drop ragged-row garbage (if any) and restore (N, C, 1, 1).
    return out.reshape(-1)[:R].reshape(N, C, 1, 1)


if __name__ == "__main__":
    key = jax.random.PRNGKey(0)

    # Main case (module-sized input): single-chunk path.
    x = jax.random.normal(key, (2, 4, 16, 16), dtype=jnp.float32)
    out = adaptive_max_pool2d(x)
    jax.block_until_ready(out)
    ref = jnp.max(x, axis=(-2, -1), keepdims=True)
    assert out.shape == (2, 4, 1, 1), out.shape
    assert jnp.allclose(out, ref), "mismatch vs reference (main)"

    # Odd shapes: exercises ragged row tiles with no host-side padding.
    x2 = jax.random.normal(jax.random.PRNGKey(1), (3, 5, 7, 9), dtype=jnp.float32)
    out2 = adaptive_max_pool2d(x2)
    jax.block_until_ready(out2)
    ref2 = jnp.max(x2, axis=(-2, -1), keepdims=True)
    assert jnp.allclose(out2, ref2), "mismatch vs reference (ragged rows)"

    # Tiny block budget: forces the chunked-HW path (scratch accumulator,
    # in-kernel lane mask for the ragged last chunk).
    x3 = jax.random.normal(jax.random.PRNGKey(2), (2, 4, 24, 20), dtype=jnp.float32)
    out3 = adaptive_max_pool2d(x3, target_block_bytes=8192)
    jax.block_until_ready(out3)
    ref3 = jnp.max(x3, axis=(-2, -1), keepdims=True)
    assert jnp.allclose(out3, ref3), "mismatch vs reference (chunked HW)"

    print("KERNEL_OK")
</pallas_src>

<mosaic_0001>
module attributes {stable_mosaic.version = 11 : i64} {
  func.func @_pool_kernel_single(%arg0: i32, %arg1: memref<8x256xf32, #tpu.memory_space<vmem>>, %arg2: memref<1x1x8xf32, #tpu.memory_space<vmem>>) attributes {dimension_semantics = [#tpu.dimension_semantics<parallel>], iteration_bounds = array<i64: 1>, scalar_prefetch = 0 : i64, scratch_operands = 0 : i64, tpu.core_type = #tpu.core_type<tc>, window_params = [{transform_indices = @transform_0, window_bounds = array<i64: 8, 256>}, {transform_indices = @transform_1, window_bounds = array<i64: 1, 1, 8>}]} {
    %c0 = arith.constant 0 : index
    %c0_0 = arith.constant 0 : index
    %0 = vector.load %arg1[%c0, %c0_0] : memref<8x256xf32, #tpu.memory_space<vmem>>, vector<8x256xf32>
    %cst = arith.constant dense<0xFF800000> : vector<8xf32>
    %1 = vector.multi_reduction <maximumf>, %0, %cst [1] : vector<8x256xf32> to vector<8xf32>
    %2 = vector.shape_cast %1 : vector<8xf32> to vector<1x1x8xf32>
    %c0_1 = arith.constant 0 : index
    %c0_2 = arith.constant 0 : index
    %c0_3 = arith.constant 0 : index
    %3 = vector.load %arg2[%c0_1, %c0_2, %c0_3] : memref<1x1x8xf32, #tpu.memory_space<vmem>>, vector<1x1x8xf32>
    tpu.vector_store %arg2[%c0_1, %c0_2, %c0_3], %2 {strides = array<i32>} : memref<1x1x8xf32, #tpu.memory_space<vmem>>, vector<1x1x8xf32>,
    return
  }
  func.func @transform_0(%arg0: i32) -> (i32, i32) {
    %c0_i32 = arith.constant 0 : i32
    %c0_i32_0 = arith.constant 0 : i32
    return %arg0, %c0_i32 : i32, i32
  }
  func.func @transform_1(%arg0: i32) -> (i32, i32, i32) {
    %c0_i32 = arith.constant 0 : i32
    %c0_i32_0 = arith.constant 0 : i32
    %c0_i32_1 = arith.constant 0 : i32
    return %arg0, %c0_i32, %c0_i32_0 : i32, i32, i32
  }
}

</mosaic_0001>

<llo_original>
// kernel: adaptive_max_pool2d.1
$region0: #{adaptive_max_pool2d.1}
  #allocation0 [shape = 'u32[]', space=smem, size = 0x4, offset = 0x4, fixed_abs, tag = 'smem constant byte address 0x4 - core index']
  #allocation1 [shape = 'u32[72,128]{1,0:T(1,128)}', space=vmem, size = 0x9000, scoped, tag = 'internal scratch']
  %s0 = inlined_call_operand.vmem [shape: f32[8,256], index: 0, kind: input, shape index: {}]
  %s1 = inlined_call_operand.vmem [shape: f32[1,1,8], index: 1, kind: output, shape index: {}]
  %s2 = sld [smem:[#allocation0]]
  $region14: #{adaptive_max_pool2d.1} parent=0
    _
  %s4 = ssub.s32 1, %s2
  %s5 = scalar_select 0, %s4, %s2
  // Predicated region
  $region2: #{adaptive_max_pool2d.1} parent=0 // pred_check
    _
  $region3: #{adaptive_max_pool2d.1} parent=0 // pred_check_branch
    %7 = sbr.rel (0) target = $region5
  $region4: #{adaptive_max_pool2d.1} parent=0 // pred_region
    _
  $region5: #{adaptive_max_pool2d.1} parent=0 // pred_fallthru
    _
  %v8 = vld [vmem:[%s0] sm:$0xff]
  %v9 = vld [vmem:[%s0 + $0x8] sm:$0xff]
  %v10 = vmax.f32 %v8, %v9
  %11 = vmax.xlane.f32.xlu0 %v10
  %v12 = vpop.xlane.xlu0 %11
  %v14 = vlaneseq
  %v15 = vand.u32 %v14, 127
  %v16 = vperm.slane %v12, %v15
  %vm18 = vcmask 57344
  %19 = vst.msk [vmem:[%s1] sm:$0x1] %vm18, %v16
  // Predicated region
  $region6: #{adaptive_max_pool2d.1} parent=0 // pred_check
    _
  $region7: #{adaptive_max_pool2d.1} parent=0 // pred_check_branch
    %21 = sbr.rel (0) target = $region9
  $region8: #{adaptive_max_pool2d.1} parent=0 // pred_region
    _
  $region9: #{adaptive_max_pool2d.1} parent=0 // pred_fallthru
    _
  // Predicated region
  $region10: #{adaptive_max_pool2d.1} parent=0 // pred_check
    _
  $region11: #{adaptive_max_pool2d.1} parent=0 // pred_check_branch
    %23 = sbr.rel (0) target = $region13
  $region12: #{adaptive_max_pool2d.1} parent=0 // pred_region
    _
  $region13: #{adaptive_max_pool2d.1} parent=0 // pred_fallthru
    _

</llo_original>
